<compile_context>
chip_gen: v7x
topology: tpu7x:2x2x1
jax: 0.10.0
libtpu: 0.0.40
codegen_flags: <defaults>
</compile_context>

<pallas_src>
import functools
import math

import jax
import jax.numpy as jnp
from jax import lax
from jax.experimental import pallas as pl
from jax.experimental.pallas import tpu as pltpu


def _adj_matrix_kernel(mask_col_ref, mask_row_ref, r_ref, o_ref, *,
                       cutoff, normalize, zero_diag, n, group, n_groups):
    # mask_col: (TB, 1, N) atom mask, lane-oriented  (m[b, j] at lane j)
    # mask_row: (TB, N, 1) atom mask, sublane-oriented (m[b, i] at row i)
    # r:        (TB, N, N) pairwise distances (native dtype)
    inv_cut = math.pi / cutoff

    if zero_diag:
        row = lax.broadcasted_iota(jnp.int32, (n, n), 0)
        col = lax.broadcasted_iota(jnp.int32, (n, n), 1)
        diag = row == col                                   # (N, N) bool
    else:
        diag = None

    def compute(r, m_row, m_col):
        r = r.astype(jnp.float32)
        # --- cutoff network (CosineCutoff) -----------------------------------
        adj = 0.5 * (jnp.cos(r * inv_cut) + 1.0)
        adj = jnp.where(r < cutoff, adj, 0.0)
        # --- remove self loops (adj -= I) ------------------------------------
        if zero_diag:
            adj = jnp.where(diag, adj - 1.0, adj)
        # --- mask non-existing atoms: adj * m_i * m_j -------------------------
        adj = adj * m_row * m_col
        # --- symmetric normalization D^{-1/2} A D^{-1/2} (broadcast scaling) --
        if normalize:
            deg_row = jnp.sum(adj, axis=-1, keepdims=True)            # (G, N, 1)
            dph_row = jnp.where(deg_row > 0.0, lax.rsqrt(deg_row), 0.0)
            # adj is symmetric here, so column degrees equal row degrees; the
            # axis=-2 reduce yields the lane-oriented dph with no relayout.
            deg_col = jnp.sum(adj, axis=-2, keepdims=True)            # (G, 1, N)
            dph_col = jnp.where(deg_col > 0.0, lax.rsqrt(deg_col), 0.0)
            adj = adj * dph_row * dph_col                             # dph_i*A*dph_j
        return adj

    if n_groups == 1:
        o_ref[...] = compute(
            r_ref[...],
            mask_row_ref[...].astype(jnp.float32),
            mask_col_ref[...].astype(jnp.float32),
        ).astype(o_ref.dtype)
    else:
        # Bound live f32 ranges: `group` molecules per iteration, full-tile DMAs.
        @pl.loop(0, n_groups)
        def _(step):
            i = pl.multiple_of(step * group, group)
            sl = pl.ds(i, group)
            o_ref[sl] = compute(
                r_ref[sl],
                mask_row_ref[sl].astype(jnp.float32),
                mask_col_ref[sl].astype(jnp.float32),
            ).astype(o_ref.dtype)


def _round_up(x, m):
    return (x + m - 1) // m * m


def _pick_group(tb, n, lane, max_bytes=256 * 1024):
    """Largest divisor of tb whose ~3 live f32 (N,N) temporaries fit max_bytes."""
    per_mol = 3 * _round_up(n, 8) * lane * 4
    g = max(1, min(tb, max_bytes // max(per_mol, 1)))
    while tb % g:
        g -= 1
    return g


def adj_matrix(atom_mask, r_ij, *, cutoff=5.0, normalize=True, zero_diag=True,
               batch_tile=None, inner_group=None,
               vmem_budget_bytes=40 * 1024 * 1024):
    """Pallas implementation of AdjMatrix.forward(atom_mask, r_ij)."""
    B, N, N2 = r_ij.shape
    assert N == N2, "r_ij must be (B, N, N)"
    out_dtype = r_ij.dtype

    # Masks are tiny (B, N): reshape + cast in the wrapper is negligible, and
    # passing both orientations removes two full-size in-kernel temporaries.
    mask_col = atom_mask.reshape(B, 1, N).astype(jnp.float32)
    mask_row = atom_mask.reshape(B, N, 1).astype(jnp.float32)

    # --- batch-tile sizing against a VMEM budget (dtype-aware padding) -------
    lane = _round_up(N, 128)
    in_item = jnp.dtype(r_ij.dtype).itemsize
    out_item = jnp.dtype(out_dtype).itemsize
    sub_in = _round_up(N, 8 * max(1, 4 // in_item))    # 8 for f32, 16 for bf16
    sub_out = _round_up(N, 8 * max(1, 4 // out_item))
    sub8 = _round_up(N, 8)
    per_elem = (sub_in * lane * in_item                # r block (padded)
                + sub_out * lane * out_item            # out block (padded)
                + 8 * lane * 4                         # (1, N) f32 mask_col
                + sub8 * 128 * 4)                      # (N, 1) f32 mask_row

    tb = max(1, int(vmem_budget_bytes // (2 * per_elem)))   # 2 = double buffer
    tb = int(min(tb, B))
    if B >= 2:
        # >= 2 grid steps so ("parallel",) shards across v7x's 2 TensorCores;
        # costs at most one extra ~0.35us step on single-TC v5e/v6e.
        tb = int(min(tb, pl.cdiv(B, 2)))
    if batch_tile is not None:
        tb = int(min(batch_tile, B))
    grid = (pl.cdiv(B, tb),)

    # Inner group: bounds live f32 temporaries; must divide tb.
    if inner_group is not None:
        group = max(1, int(min(inner_group, tb)))
        while tb % group:
            group -= 1
    else:
        group = _pick_group(tb, N, lane)
    n_groups = tb // group

    # Scoped-VMEM limit: actual double-buffered need + in-kernel f32 temps
    # + 25% headroom, clamped to [32 MiB, 48 MiB] (safe on v7x's 64 MiB).
    temp_bytes = 3 * group * sub8 * lane * 4
    needed = 2 * per_elem * tb + temp_bytes
    vmem_limit = int(max(32 * 1024 * 1024,
                         min(needed + needed // 4, 48 * 1024 * 1024)))

    kernel = functools.partial(
        _adj_matrix_kernel,
        cutoff=float(cutoff),
        normalize=normalize,
        zero_diag=zero_diag,
        n=N,
        group=group,
        n_groups=n_groups,
    )

    return pl.pallas_call(
        kernel,
        out_shape=jax.ShapeDtypeStruct((B, N, N), out_dtype),
        grid=grid,
        in_specs=[
            pl.BlockSpec((tb, 1, N), lambda b: (b, 0, 0)),   # mask (lane-oriented)
            pl.BlockSpec((tb, N, 1), lambda b: (b, 0, 0)),   # mask (row-oriented)
            pl.BlockSpec((tb, N, N), lambda b: (b, 0, 0)),   # r_ij
        ],
        out_specs=pl.BlockSpec((tb, N, N), lambda b: (b, 0, 0)),
        compiler_params=pltpu.CompilerParams(
            dimension_semantics=("parallel",),
            vmem_limit_bytes=vmem_limit,
        ),
    )(mask_col, mask_row, r_ij)


def adj_matrix_ref(atom_mask, r_ij, *, cutoff=5.0, normalize=True, zero_diag=True):
    """Pure-JAX reference mirroring the PyTorch forward exactly."""
    B, N, _ = r_ij.shape
    r = r_ij.astype(jnp.float32)
    adj = 0.5 * (jnp.cos(r * (math.pi / cutoff)) + 1.0)
    adj = adj * (r < cutoff).astype(jnp.float32)
    if zero_diag:
        adj = adj - jnp.eye(N, dtype=jnp.float32)[None]
    m = atom_mask.astype(jnp.float32)
    adj = adj * m[:, :, None] * m[:, None, :]
    if normalize:
        deg = adj.sum(axis=2)
        dph = deg ** (-0.5)
        dph = jnp.where(jnp.isinf(dph), 0.0, dph)
        dmat = jax.vmap(jnp.diag)(dph)
        adj = jnp.matmul(dmat, jnp.matmul(adj, dmat))
    return adj


if __name__ == "__main__":
    key = jax.random.PRNGKey(0)
    B, N = 8, 16
    cutoff = 5.0

    # Deterministic synthetic molecular positions -> pairwise distance matrix.
    pos = 2.0 * jax.random.normal(key, (B, N, 3), dtype=jnp.float32)
    diff = pos[:, :, None, :] - pos[:, None, :, :]
    r_ij = jnp.sqrt(jnp.sum(diff * diff, axis=-1))          # (B, N, N), symmetric

    # Atom mask with varying number of atoms per molecule (incl. edge cases).
    n_atoms = jnp.array([16, 12, 9, 16, 5, 16, 1, 8], dtype=jnp.int32)
    atom_mask = (jnp.arange(N)[None, :] < n_atoms[:, None]).astype(jnp.float32)

    ref = adj_matrix_ref(atom_mask, r_ij, cutoff=cutoff,
                         normalize=True, zero_diag=True)

    # Default path (auto batch tile, >= 2 grid steps).
    out = adj_matrix(atom_mask, r_ij, cutoff=cutoff,
                     normalize=True, zero_diag=True)
    out = jax.block_until_ready(out)
    assert out.shape == (B, N, N)
    assert jnp.allclose(out, ref, atol=1e-5, rtol=1e-5), "mismatch vs reference"

    # Explicit batch tile + inner-group loop path (exercises pl.loop body).
    out2 = adj_matrix(atom_mask, r_ij, cutoff=cutoff,
                      normalize=True, zero_diag=True,
                      batch_tile=4, inner_group=2)
    out2 = jax.block_until_ready(out2)
    assert jnp.allclose(out2, ref, atol=1e-5, rtol=1e-5), "mismatch (inner loop)"

    # Un-normalized / with self loops path.
    ref3 = adj_matrix_ref(atom_mask, r_ij, cutoff=cutoff,
                          normalize=False, zero_diag=False)
    out3 = adj_matrix(atom_mask, r_ij, cutoff=cutoff,
                      normalize=False, zero_diag=False)
    out3 = jax.block_until_ready(out3)
    assert jnp.allclose(out3, ref3, atol=1e-5, rtol=1e-5), "mismatch (raw adj)"

    print("KERNEL_OK")
</pallas_src>

<mosaic_0001>
module attributes {stable_mosaic.version = 11 : i64} {
  func.func @_adj_matrix_kernel(%arg0: i32, %arg1: memref<4x1x16xf32, #tpu.memory_space<vmem>>, %arg2: memref<4x16x1xf32, #tpu.memory_space<vmem>>, %arg3: memref<4x16x16xf32, #tpu.memory_space<vmem>>, %arg4: memref<4x16x16xf32, #tpu.memory_space<vmem>>) attributes {dimension_semantics = [#tpu.dimension_semantics<parallel>], iteration_bounds = array<i64: 2>, scalar_prefetch = 0 : i64, scratch_operands = 0 : i64, tpu.core_type = #tpu.core_type<tc>, window_params = [{transform_indices = @transform_0, window_bounds = array<i64: 4, 1, 16>}, {transform_indices = @transform_1, window_bounds = array<i64: 4, 16, 1>}, {transform_indices = @transform_2, window_bounds = array<i64: 4, 16, 16>}, {transform_indices = @transform_3, window_bounds = array<i64: 4, 16, 16>}]} {
    %0 = tpu.iota {dimensions = array<i32: 0>} : vector<16x16xi32>
    %1 = tpu.iota {dimensions = array<i32: 1>} : vector<16x16xi32>
    %2 = arith.cmpi eq, %0, %1 : vector<16x16xi32>
    %c0 = arith.constant 0 : index
    %c0_0 = arith.constant 0 : index
    %c0_1 = arith.constant 0 : index
    %3 = vector.load %arg3[%c0, %c0_0, %c0_1] : memref<4x16x16xf32, #tpu.memory_space<vmem>>, vector<4x16x16xf32>
    %c0_2 = arith.constant 0 : index
    %c0_3 = arith.constant 0 : index
    %c0_4 = arith.constant 0 : index
    %4 = vector.load %arg2[%c0_2, %c0_3, %c0_4] : memref<4x16x1xf32, #tpu.memory_space<vmem>>, vector<4x16x1xf32>
    %c0_5 = arith.constant 0 : index
    %c0_6 = arith.constant 0 : index
    %c0_7 = arith.constant 0 : index
    %5 = vector.load %arg1[%c0_5, %c0_6, %c0_7] : memref<4x1x16xf32, #tpu.memory_space<vmem>>, vector<4x1x16xf32>
    %cst = arith.constant 0.628318548 : f32
    %6 = vector.broadcast %cst : f32 to vector<4x16x16xf32>
    %7 = arith.mulf %3, %6 : vector<4x16x16xf32>
    %8 = math.cos %7 : vector<4x16x16xf32>
    %cst_8 = arith.constant 1.000000e+00 : f32
    %9 = vector.broadcast %cst_8 : f32 to vector<4x16x16xf32>
    %10 = arith.addf %8, %9 : vector<4x16x16xf32>
    %cst_9 = arith.constant 5.000000e-01 : f32
    %11 = vector.broadcast %cst_9 : f32 to vector<4x16x16xf32>
    %12 = arith.mulf %11, %10 : vector<4x16x16xf32>
    %cst_10 = arith.constant 5.000000e+00 : f32
    %13 = vector.broadcast %cst_10 : f32 to vector<4x16x16xf32>
    %14 = arith.cmpf olt, %3, %13 : vector<4x16x16xf32>
    %cst_11 = arith.constant 0.000000e+00 : f32
    %15 = vector.broadcast %cst_11 : f32 to vector<4x16x16xf32>
    %16 = arith.select %14, %12, %15 : vector<4x16x16xi1>, vector<4x16x16xf32>
    %cst_12 = arith.constant 1.000000e+00 : f32
    %17 = vector.broadcast %cst_12 : f32 to vector<4x16x16xf32>
    %18 = arith.subf %16, %17 : vector<4x16x16xf32>
    %19 = vector.shape_cast %2 : vector<16x16xi1> to vector<1x16x16xi1>
    %20 = vector.broadcast %19 : vector<1x16x16xi1> to vector<4x16x16xi1>
    %21 = arith.select %20, %18, %16 : vector<4x16x16xi1>, vector<4x16x16xf32>
    %22 = vector.broadcast %4 : vector<4x16x1xf32> to vector<4x16x16xf32>
    %23 = arith.mulf %21, %22 : vector<4x16x16xf32>
    %24 = vector.broadcast %5 : vector<4x1x16xf32> to vector<4x16x16xf32>
    %25 = arith.mulf %23, %24 : vector<4x16x16xf32>
    %cst_13 = arith.constant dense<0.000000e+00> : vector<4x16xf32>
    %26 = vector.multi_reduction <add>, %25, %cst_13 [2] : vector<4x16x16xf32> to vector<4x16xf32>
    %27 = vector.shape_cast %26 : vector<4x16xf32> to vector<4x16x1xf32>
    %cst_14 = arith.constant 0.000000e+00 : f32
    %28 = vector.broadcast %cst_14 : f32 to vector<4x16x1xf32>
    %29 = arith.cmpf ogt, %27, %28 : vector<4x16x1xf32>
    %30 = math.rsqrt %27 : vector<4x16x1xf32>
    %cst_15 = arith.constant 0.000000e+00 : f32
    %31 = vector.broadcast %cst_15 : f32 to vector<4x16x1xf32>
    %32 = arith.select %29, %30, %31 : vector<4x16x1xi1>, vector<4x16x1xf32>
    %cst_16 = arith.constant dense<0.000000e+00> : vector<4x16xf32>
    %33 = vector.multi_reduction <add>, %25, %cst_16 [1] : vector<4x16x16xf32> to vector<4x16xf32>
    %34 = vector.shape_cast %33 : vector<4x16xf32> to vector<4x1x16xf32>
    %cst_17 = arith.constant 0.000000e+00 : f32
    %35 = vector.broadcast %cst_17 : f32 to vector<4x1x16xf32>
    %36 = arith.cmpf ogt, %34, %35 : vector<4x1x16xf32>
    %37 = math.rsqrt %34 : vector<4x1x16xf32>
    %cst_18 = arith.constant 0.000000e+00 : f32
    %38 = vector.broadcast %cst_18 : f32 to vector<4x1x16xf32>
    %39 = arith.select %36, %37, %38 : vector<4x1x16xi1>, vector<4x1x16xf32>
    %40 = vector.broadcast %32 : vector<4x16x1xf32> to vector<4x16x16xf32>
    %41 = arith.mulf %25, %40 : vector<4x16x16xf32>
    %42 = vector.broadcast %39 : vector<4x1x16xf32> to vector<4x16x16xf32>
    %43 = arith.mulf %41, %42 : vector<4x16x16xf32>
    %c0_19 = arith.constant 0 : index
    %c0_20 = arith.constant 0 : index
    %c0_21 = arith.constant 0 : index
    %44 = vector.load %arg4[%c0_19, %c0_20, %c0_21] : memref<4x16x16xf32, #tpu.memory_space<vmem>>, vector<4x16x16xf32>
    tpu.vector_store %arg4[%c0_19, %c0_20, %c0_21], %43 {strides = array<i32>} : memref<4x16x16xf32, #tpu.memory_space<vmem>>, vector<4x16x16xf32>,
    return
  }
  func.func @transform_0(%arg0: i32) -> (i32, i32, i32) {
    %c0_i32 = arith.constant 0 : i32
    %c0_i32_0 = arith.constant 0 : i32
    %c0_i32_1 = arith.constant 0 : i32
    return %arg0, %c0_i32, %c0_i32_0 : i32, i32, i32
  }
  func.func @transform_1(%arg0: i32) -> (i32, i32, i32) {
    %c0_i32 = arith.constant 0 : i32
    %c0_i32_0 = arith.constant 0 : i32
    %c0_i32_1 = arith.constant 0 : i32
    return %arg0, %c0_i32, %c0_i32_0 : i32, i32, i32
  }
  func.func @transform_2(%arg0: i32) -> (i32, i32, i32) {
    %c0_i32 = arith.constant 0 : i32
    %c0_i32_0 = arith.constant 0 : i32
    %c0_i32_1 = arith.constant 0 : i32
    return %arg0, %c0_i32, %c0_i32_0 : i32, i32, i32
  }
  func.func @transform_3(%arg0: i32) -> (i32, i32, i32) {
    %c0_i32 = arith.constant 0 : i32
    %c0_i32_0 = arith.constant 0 : i32
    %c0_i32_1 = arith.constant 0 : i32
    return %arg0, %c0_i32, %c0_i32_0 : i32, i32, i32
  }
}

</mosaic_0001>

<llo_original>
// kernel: tpu_custom_call.1
$region0: #{tpu_custom_call.1}
  #allocation0 [shape = 'u32[]', space=smem, size = 0x4, offset = 0x4, fixed_abs, tag = 'smem constant byte address 0x4 - core index']
  #allocation1 [shape = 'u32[144,128]{1,0:T(1,128)}', space=vmem, size = 0x12000, scoped, tag = 'internal scratch']
  %s0 = inlined_call_operand.vmem [shape: f32[8,1,16], index: 0, kind: input, shape index: {}]
  %s1 = inlined_call_operand.vmem [shape: f32[8,16,1], index: 1, kind: input, shape index: {}]
  %s2 = inlined_call_operand.vmem [shape: f32[8,16,16], index: 2, kind: input, shape index: {}]
  %s3 = inlined_call_operand.hbm [shape: f32[8,16,16], index: 3, kind: output, shape index: {}]
  %s4 = sld [smem:[#allocation0]]
  $region45: #{tpu_custom_call.1} parent=0
    _
  %s6 = ssub.s32 1, %s4
  %s7 = scalar_select 0, %s6, %s4
  $region1: #{tpu_custom_call.1} parent=0
    #allocation2 [shape = 'u8[65536]{0}', space=vmem, size = 0x10000, scoped, tag = 'output window, operand 0']
    #allocation3 [shape = 's32[2]{0}', space=sflag, size = 0x8, scoped, tag = 'scoped memory for tpu_custom_call.1']
    %8 = vsyncpa [#allocation3], 0
    %s9 = scalar_lea.sflag [#allocation3], 1
    %10 = vsyncpa %s9, 0
    loop: start=0, step=1, limit=4
    $region2: #{tpu_custom_call.1} parent=1 // loop_pre_header
      _
    $region3: #{tpu_custom_call.1} parent=1 // loop_header
      %s12 = sphi 0, %s16
      %p13 = scmp.ge.s32.totalorder %s12, 4
      %s22 = sphi 0, %s24
      %s25 = sphi 0, %s22
      %s26 = sphi 0, %s25
      %s42 = sphi 0, %s26
      %s48 = sphi 0, %s50
      %s51 = sphi 0, %s48
      %s52 = sphi 0, %s51
      %s68 = sphi 0, %s52
      %s74 = sphi 0, %s76
      %s77 = sphi 0, %s74
      %s78 = sphi 0, %s77
      %s94 = sphi 0, %s78
      %s100 = sphi 0, %s102
      %s103 = sphi 0, %s100
      %s104 = sphi 0, %s103
      %s120 = sphi 0, %s104
    $region4: #{tpu_custom_call.1} parent=1 // loop_header_branch
      %15 = sbr.rel (%p13) target = $region8
    $region5: #{tpu_custom_call.1} parent=1 // loop_body
      %s17 = ssub.s32 %s12, 1
      %s18 = ssub.s32 %s12, 2
      %s19 = sadd.s32 %s12, 1
      %s20 = ssub.s32 %s12, %s19
      %p21 = scmp.eq.s32.totalorder %s20, 0
      %s23 = sadd.s32 %s22, 1
      %s24 = scalar_select %p21, %s22, %s23
      %p27 = pneg %p21
      %p28 = scmp.eq.s32.totalorder %s12, 1
      %p29 = por %p27, %p28
      %p30 = scmp.ne.s32.totalorder %s22, %s25
      %p31 = scmp.eq.s32.totalorder %s12, 0
      %p32 = por %p30, %p31
      %p33 = scmp.ne.s32.totalorder %s22, %s25
      %p34 = scmp.eq.s32.totalorder %s17, 1
      %p35 = por %p33, %p34
      %p36 = scmp.ne.s32.totalorder %s25, %s26
      %p37 = scmp.eq.s32.totalorder %s17, 0
      %p38 = por %p36, %p37
      %p39 = scmp.ne.s32.totalorder %s25, %s26
      %p40 = scmp.eq.s32.totalorder %s18, 1
      %p41 = por %p39, %p40
      %p43 = scmp.ne.s32.totalorder %s26, %s42
      %p44 = scmp.eq.s32.totalorder %s18, 0
      %p45 = por %p43, %p44
      %s46 = ssub.s32 %s12, %s19
      %p47 = scmp.eq.s32.totalorder %s46, 0
      %s49 = sadd.s32 %s48, 1
      %s50 = scalar_select %p47, %s48, %s49
      %p53 = pneg %p47
      %p54 = scmp.eq.s32.totalorder %s12, 1
      %p55 = por %p53, %p54
      %p56 = scmp.ne.s32.totalorder %s48, %s51
      %p57 = scmp.eq.s32.totalorder %s12, 0
      %p58 = por %p56, %p57
      %p59 = scmp.ne.s32.totalorder %s48, %s51
      %p60 = scmp.eq.s32.totalorder %s17, 1
      %p61 = por %p59, %p60
      %p62 = scmp.ne.s32.totalorder %s51, %s52
      %p63 = scmp.eq.s32.totalorder %s17, 0
      %p64 = por %p62, %p63
      %p65 = scmp.ne.s32.totalorder %s51, %s52
      %p66 = scmp.eq.s32.totalorder %s18, 1
      %p67 = por %p65, %p66
      %p69 = scmp.ne.s32.totalorder %s52, %s68
      %p70 = scmp.eq.s32.totalorder %s18, 0
      %p71 = por %p69, %p70
      %s72 = ssub.s32 %s12, %s19
      %p73 = scmp.eq.s32.totalorder %s72, 0
      %s75 = sadd.s32 %s74, 1
      %s76 = scalar_select %p73, %s74, %s75
      %p79 = pneg %p73
      %p80 = scmp.eq.s32.totalorder %s12, 1
      %p81 = por %p79, %p80
      %p82 = scmp.ne.s32.totalorder %s74, %s77
      %p83 = scmp.eq.s32.totalorder %s12, 0
      %p84 = por %p82, %p83
      %p85 = scmp.ne.s32.totalorder %s74, %s77
      %p86 = scmp.eq.s32.totalorder %s17, 1
      %p87 = por %p85, %p86
      %p88 = scmp.ne.s32.totalorder %s77, %s78
      %p89 = scmp.eq.s32.totalorder %s17, 0
      %p90 = por %p88, %p89
      %p91 = scmp.ne.s32.totalorder %s77, %s78
      %p92 = scmp.eq.s32.totalorder %s18, 1
      %p93 = por %p91, %p92
      %p95 = scmp.ne.s32.totalorder %s78, %s94
      %p96 = scmp.eq.s32.totalorder %s18, 0
      %p97 = por %p95, %p96
      %s98 = ssub.s32 %s12, %s19
      %p99 = scmp.eq.s32.totalorder %s98, 0
      %s101 = sadd.s32 %s100, 1
      %s102 = scalar_select %p99, %s100, %s101
      %p105 = pneg %p99
      %p106 = scmp.eq.s32.totalorder %s12, 1
      %p107 = por %p105, %p106
      %p108 = scmp.ne.s32.totalorder %s100, %s103
      %p109 = scmp.eq.s32.totalorder %s12, 0
      %p110 = por %p108, %p109
      %p111 = scmp.ne.s32.totalorder %s100, %s103
      %p112 = scmp.eq.s32.totalorder %s17, 1
      %p113 = por %p111, %p112
      %p114 = scmp.ne.s32.totalorder %s103, %s104
      %p115 = scmp.eq.s32.totalorder %s17, 0
      %p116 = por %p114, %p115
      %p117 = scmp.ne.s32.totalorder %s103, %s104
      %p118 = scmp.eq.s32.totalorder %s18, 1
      %p119 = por %p117, %p118
      %p121 = scmp.ne.s32.totalorder %s104, %s120
      %p122 = scmp.eq.s32.totalorder %s18, 0
      %p123 = por %p121, %p122
      %p124 = scmp.le.s32.totalorder 1, %s12
      %p125 = scmp.lt.s32.totalorder %s12, 3
      %p126 = pnand %p124, %p125
      %p127 = pneg %p126
      // Predicated region
      $region9: #{tpu_custom_call.1} parent=5 // pred_check
        _
      $region10: #{tpu_custom_call.1} parent=5 // pred_check_branch
        %129 = sbr.rel (%p126) target = $region12
      $region11: #{tpu_custom_call.1} parent=5 // pred_region
        %s130 = ssub.s32 %s12, 1
      $region12: #{tpu_custom_call.1} parent=5 // pred_fallthru
        _
      %p131 = scmp.lt.s32.totalorder %s12, 2
      // Predicated region
      $region13: #{tpu_custom_call.1} parent=5 // pred_check
        %p132 = pneg %p131
      $region14: #{tpu_custom_call.1} parent=5 // pred_check_branch
        %134 = sbr.rel (%p132) target = $region16
      $region15: #{tpu_custom_call.1} parent=5 // pred_region
        // Predicated region
        $region17: #{tpu_custom_call.1} parent=15 // pred_check
          %p135 = pneg %p32
        $region18: #{tpu_custom_call.1} parent=15 // pred_check_branch
          %137 = sbr.rel (%p135) target = $region20
        $region19: #{tpu_custom_call.1} parent=15 // pred_region
          %s138 = smul.u32 4, %s12
          %p139 = scmp.lt.s32.totalorder %s138, 7
          %s140 = scalar_select %p139, %s138, 7
          %s141 = scalar_lea.vmem %s0, %s140
          %s142 = smul.u32 4, %s12
        $region20: #{tpu_custom_call.1} parent=15 // pred_fallthru
          _
        // Predicated region
        $region21: #{tpu_custom_call.1} parent=15 // pred_check
          %p143 = pneg %p58
        $region22: #{tpu_custom_call.1} parent=15 // pred_check_branch
          %145 = sbr.rel (%p143) target = $region24
        $region23: #{tpu_custom_call.1} parent=15 // pred_region
          %s146 = smul.u32 4, %s12
          %p147 = scmp.lt.s32.totalorder %s146, 7
          %s148 = scalar_select %p147, %s146, 7
          %s149 = smul.addr %s148, 2
          %s150 = smul.addr %s149, 8
          %s151 = scalar_lea.vmem %s1, %s150
          %s152 = smul.u32 4, %s12
        $region24: #{tpu_custom_call.1} parent=15 // pred_fallthru
          _
        // Predicated region
        $region25: #{tpu_custom_call.1} parent=15 // pred_check
          %p153 = pneg %p84
        $region26: #{tpu_custom_call.1} parent=15 // pred_check_branch
          %155 = sbr.rel (%p153) target = $region28
        $region27: #{tpu_custom_call.1} parent=15 // pred_region
          %s156 = smul.u32 4, %s12
          %p157 = scmp.lt.s32.totalorder %s156, 7
          %s158 = scalar_select %p157, %s156, 7
          %s159 = smul.addr %s158, 2
          %s160 = smul.addr %s159, 8
          %s161 = scalar_lea.vmem %s2, %s160
          %s162 = smul.u32 4, %s12
        $region28: #{tpu_custom_call.1} parent=15 // pred_fallthru
          _
      $region16: #{tpu_custom_call.1} parent=5 // pred_fallthru
        _
      %p163 = scmp.le.s32.totalorder 1, %s12
      %p164 = scmp.lt.s32.totalorder %s12, 3
      %p165 = pnand %p163, %p164
      %p166 = pneg %p165
      // Predicated region
      $region29: #{tpu_custom_call.1} parent=5 // pred_check
        _
      $region30: #{tpu_custom_call.1} parent=5 // pred_check_branch
        %168 = sbr.rel (%p165) target = $region32
      $region31: #{tpu_custom_call.1} parent=5 // pred_region
        %s169 = ssub.s32 %s12, 1
        %s170 = smul.u32 4, %s17
        %p171 = scmp.lt.s32.totalorder %s170, 7
        %s172 = scalar_select %p171, %s170, 7
        %s173 = scalar_lea.vmem %s0, %s172
        %p174 = pneg %p38
        %p175 = pneg %p35
        %s176 = smul.u32 4, %s17
        %p177 = scmp.lt.s32.totalorder %s176, 7
        %s178 = scalar_select %p177, %s176, 7
        %s179 = smul.addr %s178, 2
        %s180 = smul.addr %s179, 8
        %s181 = scalar_lea.vmem %s1, %s180
        %p182 = pneg %p64
        %p183 = pneg %p61
        %s184 = smul.u32 4, %s17
        %p185 = scmp.lt.s32.totalorder %s184, 7
        %s186 = scalar_select %p185, %s184, 7
        %s187 = smul.addr %s186, 2
        %s188 = smul.addr %s187, 8
        %s189 = scalar_lea.vmem %s2, %s188
        %p190 = pneg %p90
        %p191 = pneg %p87
        %p192 = pneg %p116
        %p193 = pneg %p113
        %s194 = sand.u32 %s103, 1
        %s195 = scalar_lea.sflag [#allocation3], %s194
        %s196 = sand.u32 %s103, 1
        %s197 = smul.addr %s196, 64
        %s198 = scalar_lea.vmem [#allocation2], %s197
        %s199 = smul.u32 4, %s17
        %p200 = scmp.lt.s32.totalorder %s199, 7
        %s201 = scalar_select %p200, %s199, 7
        %s202 = scalar_lea.vmem %s0, %s201
        %s203 = smul.u32 4, %s17
        %s204 = smul.u32 4, %s17
        %p205 = scmp.lt.s32.totalorder %s204, 7
        %s206 = scalar_select %p205, %s204, 7
        %s207 = smul.addr %s206, 2
        %s208 = smul.addr %s207, 8
        %s209 = scalar_lea.vmem %s1, %s208
        %s210 = smul.u32 4, %s17
        %s211 = smul.u32 4, %s17
        %p212 = scmp.lt.s32.totalorder %s211, 7
        %s213 = scalar_select %p212, %s211, 7
        %s214 = smul.addr %s213, 2
        %s215 = smul.addr %s214, 8
        %s216 = scalar_lea.vmem %s2, %s215
        %s217 = smul.u32 4, %s17
        %s218 = smul.u32 4, %s17
        %v219 = vlaneseq
        %v220 = vshrl.u32 %v219, 7
        %v221 = vadd.s32 %v220, 8
        %v222 = vlaneseq
        %v223 = vand.u32 %v222, 127
        %vm224 = vcmp.eq.s32.totalorder %v220, %v223
        %vm225 = vcmp.eq.s32.totalorder %v221, %v223
        %v226 = vld [vmem:[%s216] sm:$0xff]
        %v227 = vld [vmem:[%s216 + $0x8] sm:$0xff]
        %v228 = vld [vmem:[%s216 + $0x10] sm:$0xff]
        %v229 = vld [vmem:[%s216 + $0x18] sm:$0xff]
        %v230 = vld [vmem:[%s216 + $0x20] sm:$0xff]
        %v231 = vld [vmem:[%s216 + $0x28] sm:$0xff]
        %v232 = vld [vmem:[%s216 + $0x30] sm:$0xff]
        %v233 = vld [vmem:[%s216 + $0x38] sm:$0xff]
        %v234 = vld [vmem:[%s209] sm:$0xff]
        %v235 = vld [vmem:[%s209 + $0x8] sm:$0xff]
        %v236 = vld [vmem:[%s209 + $0x10] sm:$0xff]
        %v237 = vld [vmem:[%s209 + $0x18] sm:$0xff]
        %v238 = vld [vmem:[%s209 + $0x20] sm:$0xff]
        %v239 = vld [vmem:[%s209 + $0x28] sm:$0xff]
        %v240 = vld [vmem:[%s209 + $0x30] sm:$0xff]
        %v241 = vld [vmem:[%s209 + $0x38] sm:$0xff]
        %v242 = vld [vmem:[%s202] sm:$0x1]
        %v243 = vld [vmem:[%s202 + $0x1] sm:$0x1]
        %v244 = vld [vmem:[%s202 + $0x2] sm:$0x1]
        %v245 = vld [vmem:[%s202 + $0x3] sm:$0x1]
        %v246 = vmul.f32 %v226, 0.62831855
        %v247 = vmul.f32 %v227, 0.62831855
        %v248 = vmul.f32 %v228, 0.62831855
        %v249 = vmul.f32 %v229, 0.62831855
        %v250 = vmul.f32 %v230, 0.62831855
        %v251 = vmul.f32 %v231, 0.62831855
        %v252 = vmul.f32 %v232, 0.62831855
        %v253 = vmul.f32 %v233, 0.62831855
        %v254 = vand.u32 2147483647, %v246
        %vm255 = vcmp.le.f32.partialorder %v254, 0.7853982
        %vm256 = vcmp.lt.s32.totalorder %v246, 0
        %v257 = vand.u32 %v246, 2139095040
        %v258 = vshrl.u32 %v257, 23
        %v259 = vsub.s32 %v258, 127
        %v260 = vand.u32 2147483647, %v246
        %v261 = vand.u32 %v260, 8388607
        %v262 = vor.u32 %v261, 8388608
        %v263 = vsub.s32 0, %v262
        %v264 = vadd.s32 %v259, 1
        %vm265 = vcmp.gt.s32.totalorder %v264, 0
        %v266 = vsel %vm265, %v264, 0
        %v267 = vshrl.u32 %v266, 5
        %v268 = vand.u32 %v266, 31
        %v269 = vsub.s32 32, %v268
        %v270 = vshrl.u32 683565275, %v269
        %v271 = vshll.u32 683565275, %v268
        %v272 = vshrl.u32 2475754826, %v269
        %v273 = vor.u32 %v271, %v272
        %v274 = vshll.u32 2475754826, %v268
        %v275 = vshrl.u32 2131351028, %v269
        %v276 = vor.u32 %v274, %v275
        %v277 = vshll.u32 2131351028, %v268
        %v278 = vshrl.u32 2102212464, %v269
        %v279 = vor.u32 %v277, %v278
        %v280 = vshll.u32 2102212464, %v268
        %v281 = vshrl.u32 920167782, %v269
        %v282 = vor.u32 %v280, %v281
        %v283 = vshll.u32 920167782, %v268
        %v284 = vshrl.u32 1326507024, %v269
        %v285 = vor.u32 %v283, %v284
        %vm286 = vcmp.lt.s32.totalorder %v267, 1
        %vm287 = vcmp.lt.s32.totalorder %v267, 2
        %vm288 = vcmp.lt.s32.totalorder %v267, 3
        %vm289 = vcmp.lt.s32.totalorder %v267, 4
        %v290 = vsel %vm286, %v270, %v273
        %v291 = vsel %vm289, %v279, 2102212464
        %v292 = vsel %vm288, %v276, %v291
        %v293 = vsel %vm287, %v290, %v292
        %v294 = vsel %vm286, %v273, %v276
        %v295 = vsel %vm289, %v282, 920167782
        %v296 = vsel %vm288, %v279, %v295
        %v297 = vsel %vm287, %v294, %v296
        %v298 = vsel %vm286, %v276, %v279
        %v299 = vsel %vm289, %v285, 1326507024
        %v300 = vsel %vm288, %v282, %v299
        %v301 = vsel %vm287, %v298, %v300
        %v302 = vshll.u32 %v262, 8
        %v303 = vmul.u32.u64.compose %v302, %v301
        %v304 = vextract.low.u32 %v303
        %v305 = vextract.high.u32 %v303
        %v306 = vmul.u32.u64.compose %v302, %v297
        %v307 = vextract.low.u32 %v306
        %v308 = vextract.high.u32 %v306
        %v309 = vmul.u32 %v302, %v293
        %v310 = vadd.s32 %v305, %v307
        %vm311 = vc.u32 %v305, %v307
        %v312 = vadd.s32 %v308, 1
        %v313 = vsel %vm311, %v312, %v308
        %v314 = vadd.s32 %v309, %v313
        %v315 = vadd.s32 %v314, 536870912
        %v316 = vshrl.u32 %v315, 30
        %v317 = vshll.u32 %v316, 30
        %v318 = vsub.s32 %v314, %v317
        %vm319 = vcmp.lt.s32.totalorder %v318, 0
        %v320 = vsub.s32 0, %v318
        %v321 = vsel %vm319, %v320, %v318
        %v322 = vclz %v321
        %v323 = vsub.s32 %v322, 2
        %vm324 = vcmp.gt.s32.totalorder 0, %v323
        %v325 = vsel %vm324, 0, %v323
        %v326 = vsub.s32 32, %v325
        %v327 = vshll.u32 %v318, %v325
        %v328 = vshrl.u32 %v310, %v326
        %v329 = vor.u32 %v327, %v328
        %v330 = vsub.s32 4294967266, %v325
        %v331 = vadd.s32 %v330, 127
        %v332 = vshll.u32 %v331, 23
        %v333 = vor.u32 4788187, %v332
        %v334 = vand.u32 2147483647, %v333
        %v336 = vcvt.s32.f32 %v329
        %v337 = vmul.f32 %v336, %v334
        %v338 = vxor.u32 %v337, 2147483648
        %v339 = vsel %vm256, %v338, %v337
        %v340 = vsub.s32 4, %v316
        %v341 = vsel %vm256, %v340, %v316
        %v342 = vsel %vm255, %v246, %v339
        %v343 = vsel %vm255, 0, %v341
        %v344 = vcosq.f32.pop %v342
        %v345 = vsinq.f32.pop %v342
        %vm346 = vweird.f32 %v246
        %v347 = vand.u32 %v343, 3
        %vm348 = vcmp.lt.s32.totalorder %v347, 2
        %vm349 = vcmp.eq.s32.totalorder %v347, 0
        %v350 = vxor.u32 %v345, 2147483648
        %v351 = vsel %vm349, %v344, %v350
        %vm352 = vcmp.eq.s32.totalorder %v347, 2
        %v353 = vxor.u32 %v344, 2147483648
        %v354 = vsel %vm352, %v353, %v345
        %v355 = vsel %vm348, %v351, %v354
        %v356 = vsel %vm346, nan, %v355
        %v357 = vand.u32 2147483647, %v247
        %vm358 = vcmp.le.f32.partialorder %v357, 0.7853982
        %vm359 = vcmp.lt.s32.totalorder %v247, 0
        %v360 = vand.u32 %v247, 2139095040
        %v361 = vshrl.u32 %v360, 23
        %v362 = vsub.s32 %v361, 127
        %v363 = vand.u32 2147483647, %v247
        %v364 = vand.u32 %v363, 8388607
        %v365 = vor.u32 %v364, 8388608
        %v366 = vsub.s32 0, %v365
        %v367 = vadd.s32 %v362, 1
        %vm368 = vcmp.gt.s32.totalorder %v367, 0
        %v369 = vsel %vm368, %v367, 0
        %v370 = vshrl.u32 %v369, 5
        %v371 = vand.u32 %v369, 31
        %v372 = vsub.s32 32, %v371
        %v373 = vshrl.u32 683565275, %v372
        %v374 = vshll.u32 683565275, %v371
        %v375 = vshrl.u32 2475754826, %v372
        %v376 = vor.u32 %v374, %v375
        %v377 = vshll.u32 2475754826, %v371
        %v378 = vshrl.u32 2131351028, %v372
        %v379 = vor.u32 %v377, %v378
        %v380 = vshll.u32 2131351028, %v371
        %v381 = vshrl.u32 2102212464, %v372
        %v382 = vor.u32 %v380, %v381
        %v383 = vshll.u32 2102212464, %v371
        %v384 = vshrl.u32 920167782, %v372
        %v385 = vor.u32 %v383, %v384
        %v386 = vshll.u32 920167782, %v371
        %v387 = vshrl.u32 1326507024, %v372
        %v388 = vor.u32 %v386, %v387
        %vm389 = vcmp.lt.s32.totalorder %v370, 1
        %vm390 = vcmp.lt.s32.totalorder %v370, 2
        %vm391 = vcmp.lt.s32.totalorder %v370, 3
        %vm392 = vcmp.lt.s32.totalorder %v370, 4
        %v393 = vsel %vm389, %v373, %v376
        %v394 = vsel %vm392, %v382, 2102212464
        %v395 = vsel %vm391, %v379, %v394
        %v396 = vsel %vm390, %v393, %v395
        %v397 = vsel %vm389, %v376, %v379
        %v398 = vsel %vm392, %v385, 920167782
        %v399 = vsel %vm391, %v382, %v398
        %v400 = vsel %vm390, %v397, %v399
        %v401 = vsel %vm389, %v379, %v382
        %v402 = vsel %vm392, %v388, 1326507024
        %v403 = vsel %vm391, %v385, %v402
        %v404 = vsel %vm390, %v401, %v403
        %v405 = vshll.u32 %v365, 8
        %v406 = vmul.u32.u64.compose %v405, %v404
        %v407 = vextract.low.u32 %v406
        %v408 = vextract.high.u32 %v406
        %v409 = vmul.u32.u64.compose %v405, %v400
        %v410 = vextract.low.u32 %v409
        %v411 = vextract.high.u32 %v409
        %v412 = vmul.u32 %v405, %v396
        %v413 = vadd.s32 %v408, %v410
        %vm414 = vc.u32 %v408, %v410
        %v415 = vadd.s32 %v411, 1
        %v416 = vsel %vm414, %v415, %v411
        %v417 = vadd.s32 %v412, %v416
        %v418 = vadd.s32 %v417, 536870912
        %v419 = vshrl.u32 %v418, 30
        %v420 = vshll.u32 %v419, 30
        %v421 = vsub.s32 %v417, %v420
        %vm422 = vcmp.lt.s32.totalorder %v421, 0
        %v423 = vsub.s32 0, %v421
        %v424 = vsel %vm422, %v423, %v421
        %v425 = vclz %v424
        %v426 = vsub.s32 %v425, 2
        %vm427 = vcmp.gt.s32.totalorder 0, %v426
        %v428 = vsel %vm427, 0, %v426
        %v429 = vsub.s32 32, %v428
        %v430 = vshll.u32 %v421, %v428
        %v431 = vshrl.u32 %v413, %v429
        %v432 = vor.u32 %v430, %v431
        %v433 = vsub.s32 4294967266, %v428
        %v434 = vadd.s32 %v433, 127
        %v435 = vshll.u32 %v434, 23
        %v436 = vor.u32 4788187, %v435
        %v437 = vand.u32 2147483647, %v436
        %v439 = vcvt.s32.f32 %v432
        %v440 = vmul.f32 %v439, %v437
        %v441 = vxor.u32 %v440, 2147483648
        %v442 = vsel %vm359, %v441, %v440
        %v443 = vsub.s32 4, %v419
        %v444 = vsel %vm359, %v443, %v419
        %v445 = vsel %vm358, %v247, %v442
        %v446 = vsel %vm358, 0, %v444
        %v447 = vcosq.f32.pop %v445
        %v448 = vsinq.f32.pop %v445
        %vm449 = vweird.f32 %v247
        %v450 = vand.u32 %v446, 3
        %vm451 = vcmp.lt.s32.totalorder %v450, 2
        %vm452 = vcmp.eq.s32.totalorder %v450, 0
        %v453 = vxor.u32 %v448, 2147483648
        %v454 = vsel %vm452, %v447, %v453
        %vm455 = vcmp.eq.s32.totalorder %v450, 2
        %v456 = vxor.u32 %v447, 2147483648
        %v457 = vsel %vm455, %v456, %v448
        %v458 = vsel %vm451, %v454, %v457
        %v459 = vsel %vm449, nan, %v458
        %v460 = vand.u32 2147483647, %v248
        %vm461 = vcmp.le.f32.partialorder %v460, 0.7853982
        %vm462 = vcmp.lt.s32.totalorder %v248, 0
        %v463 = vand.u32 %v248, 2139095040
        %v464 = vshrl.u32 %v463, 23
        %v465 = vsub.s32 %v464, 127
        %v466 = vand.u32 2147483647, %v248
        %v467 = vand.u32 %v466, 8388607
        %v468 = vor.u32 %v467, 8388608
        %v469 = vsub.s32 0, %v468
        %v470 = vadd.s32 %v465, 1
        %vm471 = vcmp.gt.s32.totalorder %v470, 0
        %v472 = vsel %vm471, %v470, 0
        %v473 = vshrl.u32 %v472, 5
        %v474 = vand.u32 %v472, 31
        %v475 = vsub.s32 32, %v474
        %v476 = vshrl.u32 683565275, %v475
        %v477 = vshll.u32 683565275, %v474
        %v478 = vshrl.u32 2475754826, %v475
        %v479 = vor.u32 %v477, %v478
        %v480 = vshll.u32 2475754826, %v474
        %v481 = vshrl.u32 2131351028, %v475
        %v482 = vor.u32 %v480, %v481
        %v483 = vshll.u32 2131351028, %v474
        %v484 = vshrl.u32 2102212464, %v475
        %v485 = vor.u32 %v483, %v484
        %v486 = vshll.u32 2102212464, %v474
        %v487 = vshrl.u32 920167782, %v475
        %v488 = vor.u32 %v486, %v487
        %v489 = vshll.u32 920167782, %v474
        %v490 = vshrl.u32 1326507024, %v475
        %v491 = vor.u32 %v489, %v490
        %vm492 = vcmp.lt.s32.totalorder %v473, 1
        %vm493 = vcmp.lt.s32.totalorder %v473, 2
        %vm494 = vcmp.lt.s32.totalorder %v473, 3
        %vm495 = vcmp.lt.s32.totalorder %v473, 4
        %v496 = vsel %vm492, %v476, %v479
        %v497 = vsel %vm495, %v485, 2102212464
        %v498 = vsel %vm494, %v482, %v497
        %v499 = vsel %vm493, %v496, %v498
        %v500 = vsel %vm492, %v479, %v482
        %v501 = vsel %vm495, %v488, 920167782
        %v502 = vsel %vm494, %v485, %v501
        %v503 = vsel %vm493, %v500, %v502
        %v504 = vsel %vm492, %v482, %v485
        %v505 = vsel %vm495, %v491, 1326507024
        %v506 = vsel %vm494, %v488, %v505
        %v507 = vsel %vm493, %v504, %v506
        %v508 = vshll.u32 %v468, 8
        %v509 = vmul.u32.u64.compose %v508, %v507
        %v510 = vextract.low.u32 %v509
        %v511 = vextract.high.u32 %v509
        %v512 = vmul.u32.u64.compose %v508, %v503
        %v513 = vextract.low.u32 %v512
        %v514 = vextract.high.u32 %v512
        %v515 = vmul.u32 %v508, %v499
        %v516 = vadd.s32 %v511, %v513
        %vm517 = vc.u32 %v511, %v513
        %v518 = vadd.s32 %v514, 1
        %v519 = vsel %vm517, %v518, %v514
        %v520 = vadd.s32 %v515, %v519
        %v521 = vadd.s32 %v520, 536870912
        %v522 = vshrl.u32 %v521, 30
        %v523 = vshll.u32 %v522, 30
        %v524 = vsub.s32 %v520, %v523
        %vm525 = vcmp.lt.s32.totalorder %v524, 0
        %v526 = vsub.s32 0, %v524
        %v527 = vsel %vm525, %v526, %v524
        %v528 = vclz %v527
        %v529 = vsub.s32 %v528, 2
        %vm530 = vcmp.gt.s32.totalorder 0, %v529
        %v531 = vsel %vm530, 0, %v529
        %v532 = vsub.s32 32, %v531
        %v533 = vshll.u32 %v524, %v531
        %v534 = vshrl.u32 %v516, %v532
        %v535 = vor.u32 %v533, %v534
        %v536 = vsub.s32 4294967266, %v531
        %v537 = vadd.s32 %v536, 127
        %v538 = vshll.u32 %v537, 23
        %v539 = vor.u32 4788187, %v538
        %v540 = vand.u32 2147483647, %v539
        %v542 = vcvt.s32.f32 %v535
        %v543 = vmul.f32 %v542, %v540
        %v544 = vxor.u32 %v543, 2147483648
        %v545 = vsel %vm462, %v544, %v543
        %v546 = vsub.s32 4, %v522
        %v547 = vsel %vm462, %v546, %v522
        %v548 = vsel %vm461, %v248, %v545
        %v549 = vsel %vm461, 0, %v547
        %v550 = vcosq.f32.pop %v548
        %v551 = vsinq.f32.pop %v548
        %vm552 = vweird.f32 %v248
        %v553 = vand.u32 %v549, 3
        %vm554 = vcmp.lt.s32.totalorder %v553, 2
        %vm555 = vcmp.eq.s32.totalorder %v553, 0
        %v556 = vxor.u32 %v551, 2147483648
        %v557 = vsel %vm555, %v550, %v556
        %vm558 = vcmp.eq.s32.totalorder %v553, 2
        %v559 = vxor.u32 %v550, 2147483648
        %v560 = vsel %vm558, %v559, %v551
        %v561 = vsel %vm554, %v557, %v560
        %v562 = vsel %vm552, nan, %v561
        %v563 = vand.u32 2147483647, %v249
        %vm564 = vcmp.le.f32.partialorder %v563, 0.7853982
        %vm565 = vcmp.lt.s32.totalorder %v249, 0
        %v566 = vand.u32 %v249, 2139095040
        %v567 = vshrl.u32 %v566, 23
        %v568 = vsub.s32 %v567, 127
        %v569 = vand.u32 2147483647, %v249
        %v570 = vand.u32 %v569, 8388607
        %v571 = vor.u32 %v570, 8388608
        %v572 = vsub.s32 0, %v571
        %v573 = vadd.s32 %v568, 1
        %vm574 = vcmp.gt.s32.totalorder %v573, 0
        %v575 = vsel %vm574, %v573, 0
        %v576 = vshrl.u32 %v575, 5
        %v577 = vand.u32 %v575, 31
        %v578 = vsub.s32 32, %v577
        %v579 = vshrl.u32 683565275, %v578
        %v580 = vshll.u32 683565275, %v577
        %v581 = vshrl.u32 2475754826, %v578
        %v582 = vor.u32 %v580, %v581
        %v583 = vshll.u32 2475754826, %v577
        %v584 = vshrl.u32 2131351028, %v578
        %v585 = vor.u32 %v583, %v584
        %v586 = vshll.u32 2131351028, %v577
        %v587 = vshrl.u32 2102212464, %v578
        %v588 = vor.u32 %v586, %v587
        %v589 = vshll.u32 2102212464, %v577
        %v590 = vshrl.u32 920167782, %v578
        %v591 = vor.u32 %v589, %v590
        %v592 = vshll.u32 920167782, %v577
        %v593 = vshrl.u32 1326507024, %v578
        %v594 = vor.u32 %v592, %v593
        %vm595 = vcmp.lt.s32.totalorder %v576, 1
        %vm596 = vcmp.lt.s32.totalorder %v576, 2
        %vm597 = vcmp.lt.s32.totalorder %v576, 3
        %vm598 = vcmp.lt.s32.totalorder %v576, 4
        %v599 = vsel %vm595, %v579, %v582
        %v600 = vsel %vm598, %v588, 2102212464
        %v601 = vsel %vm597, %v585, %v600
        %v602 = vsel %vm596, %v599, %v601
        %v603 = vsel %vm595, %v582, %v585
        %v604 = vsel %vm598, %v591, 920167782
        %v605 = vsel %vm597, %v588, %v604
        %v606 = vsel %vm596, %v603, %v605
        %v607 = vsel %vm595, %v585, %v588
        %v608 = vsel %vm598, %v594, 1326507024
        %v609 = vsel %vm597, %v591, %v608
        %v610 = vsel %vm596, %v607, %v609
        %v611 = vshll.u32 %v571, 8
        %v612 = vmul.u32.u64.compose %v611, %v610
        %v613 = vextract.low.u32 %v612
        %v614 = vextract.high.u32 %v612
        %v615 = vmul.u32.u64.compose %v611, %v606
        %v616 = vextract.low.u32 %v615
        %v617 = vextract.high.u32 %v615
        %v618 = vmul.u32 %v611, %v602
        %v619 = vadd.s32 %v614, %v616
        %vm620 = vc.u32 %v614, %v616
        %v621 = vadd.s32 %v617, 1
        %v622 = vsel %vm620, %v621, %v617
        %v623 = vadd.s32 %v618, %v622
        %v624 = vadd.s32 %v623, 536870912
        %v625 = vshrl.u32 %v624, 30
        %v626 = vshll.u32 %v625, 30
        %v627 = vsub.s32 %v623, %v626
        %vm628 = vcmp.lt.s32.totalorder %v627, 0
        %v629 = vsub.s32 0, %v627
        %v630 = vsel %vm628, %v629, %v627
        %v631 = vclz %v630
        %v632 = vsub.s32 %v631, 2
        %vm633 = vcmp.gt.s32.totalorder 0, %v632
        %v634 = vsel %vm633, 0, %v632
        %v635 = vsub.s32 32, %v634
        %v636 = vshll.u32 %v627, %v634
        %v637 = vshrl.u32 %v619, %v635
        %v638 = vor.u32 %v636, %v637
        %v639 = vsub.s32 4294967266, %v634
        %v640 = vadd.s32 %v639, 127
        %v641 = vshll.u32 %v640, 23
        %v642 = vor.u32 4788187, %v641
        %v643 = vand.u32 2147483647, %v642
        %v645 = vcvt.s32.f32 %v638
        %v646 = vmul.f32 %v645, %v643
        %v647 = vxor.u32 %v646, 2147483648
        %v648 = vsel %vm565, %v647, %v646
        %v649 = vsub.s32 4, %v625
        %v650 = vsel %vm565, %v649, %v625
        %v651 = vsel %vm564, %v249, %v648
        %v652 = vsel %vm564, 0, %v650
        %v653 = vcosq.f32.pop %v651
        %v654 = vsinq.f32.pop %v651
        %vm655 = vweird.f32 %v249
        %v656 = vand.u32 %v652, 3
        %vm657 = vcmp.lt.s32.totalorder %v656, 2
        %vm658 = vcmp.eq.s32.totalorder %v656, 0
        %v659 = vxor.u32 %v654, 2147483648
        %v660 = vsel %vm658, %v653, %v659
        %vm661 = vcmp.eq.s32.totalorder %v656, 2
        %v662 = vxor.u32 %v653, 2147483648
        %v663 = vsel %vm661, %v662, %v654
        %v664 = vsel %vm657, %v660, %v663
        %v665 = vsel %vm655, nan, %v664
        %v666 = vand.u32 2147483647, %v250
        %vm667 = vcmp.le.f32.partialorder %v666, 0.7853982
        %vm668 = vcmp.lt.s32.totalorder %v250, 0
        %v669 = vand.u32 %v250, 2139095040
        %v670 = vshrl.u32 %v669, 23
        %v671 = vsub.s32 %v670, 127
        %v672 = vand.u32 2147483647, %v250
        %v673 = vand.u32 %v672, 8388607
        %v674 = vor.u32 %v673, 8388608
        %v675 = vsub.s32 0, %v674
        %v676 = vadd.s32 %v671, 1
        %vm677 = vcmp.gt.s32.totalorder %v676, 0
        %v678 = vsel %vm677, %v676, 0
        %v679 = vshrl.u32 %v678, 5
        %v680 = vand.u32 %v678, 31
        %v681 = vsub.s32 32, %v680
        %v682 = vshrl.u32 683565275, %v681
        %v683 = vshll.u32 683565275, %v680
        %v684 = vshrl.u32 2475754826, %v681
        %v685 = vor.u32 %v683, %v684
        %v686 = vshll.u32 2475754826, %v680
        %v687 = vshrl.u32 2131351028, %v681
        %v688 = vor.u32 %v686, %v687
        %v689 = vshll.u32 2131351028, %v680
        %v690 = vshrl.u32 2102212464, %v681
        %v691 = vor.u32 %v689, %v690
        %v692 = vshll.u32 2102212464, %v680
        %v693 = vshrl.u32 920167782, %v681
        %v694 = vor.u32 %v692, %v693
        %v695 = vshll.u32 920167782, %v680
        %v696 = vshrl.u32 1326507024, %v681
        %v697 = vor.u32 %v695, %v696
        %vm698 = vcmp.lt.s32.totalorder %v679, 1
        %vm699 = vcmp.lt.s32.totalorder %v679, 2
        %vm700 = vcmp.lt.s32.totalorder %v679, 3
        %vm701 = vcmp.lt.s32.totalorder %v679, 4
        %v702 = vsel %vm698, %v682, %v685
        %v703 = vsel %vm701, %v691, 2102212464
        %v704 = vsel %vm700, %v688, %v703
        %v705 = vsel %vm699, %v702, %v704
        %v706 = vsel %vm698, %v685, %v688
        %v707 = vsel %vm701, %v694, 920167782
        %v708 = vsel %vm700, %v691, %v707
        %v709 = vsel %vm699, %v706, %v708
        %v710 = vsel %vm698, %v688, %v691
        %v711 = vsel %vm701, %v697, 1326507024
        %v712 = vsel %vm700, %v694, %v711
        %v713 = vsel %vm699, %v710, %v712
        %v714 = vshll.u32 %v674, 8
        %v715 = vmul.u32.u64.compose %v714, %v713
        %v716 = vextract.low.u32 %v715
        %v717 = vextract.high.u32 %v715
        %v718 = vmul.u32.u64.compose %v714, %v709
        %v719 = vextract.low.u32 %v718
        %v720 = vextract.high.u32 %v718
        %v721 = vmul.u32 %v714, %v705
        %v722 = vadd.s32 %v717, %v719
        %vm723 = vc.u32 %v717, %v719
        %v724 = vadd.s32 %v720, 1
        %v725 = vsel %vm723, %v724, %v720
        %v726 = vadd.s32 %v721, %v725
        %v727 = vadd.s32 %v726, 536870912
        %v728 = vshrl.u32 %v727, 30
        %v729 = vshll.u32 %v728, 30
        %v730 = vsub.s32 %v726, %v729
        %vm731 = vcmp.lt.s32.totalorder %v730, 0
        %v732 = vsub.s32 0, %v730
        %v733 = vsel %vm731, %v732, %v730
        %v734 = vclz %v733
        %v735 = vsub.s32 %v734, 2
        %vm736 = vcmp.gt.s32.totalorder 0, %v735
        %v737 = vsel %vm736, 0, %v735
        %v738 = vsub.s32 32, %v737
        %v739 = vshll.u32 %v730, %v737
        %v740 = vshrl.u32 %v722, %v738
        %v741 = vor.u32 %v739, %v740
        %v742 = vsub.s32 4294967266, %v737
        %v743 = vadd.s32 %v742, 127
        %v744 = vshll.u32 %v743, 23
        %v745 = vor.u32 4788187, %v744
        %v746 = vand.u32 2147483647, %v745
        %v748 = vcvt.s32.f32 %v741
        %v749 = vmul.f32 %v748, %v746
        %v750 = vxor.u32 %v749, 2147483648
        %v751 = vsel %vm668, %v750, %v749
        %v752 = vsub.s32 4, %v728
        %v753 = vsel %vm668, %v752, %v728
        %v754 = vsel %vm667, %v250, %v751
        %v755 = vsel %vm667, 0, %v753
        %v756 = vcosq.f32.pop %v754
        %v757 = vsinq.f32.pop %v754
        %vm758 = vweird.f32 %v250
        %v759 = vand.u32 %v755, 3
        %vm760 = vcmp.lt.s32.totalorder %v759, 2
        %vm761 = vcmp.eq.s32.totalorder %v759, 0
        %v762 = vxor.u32 %v757, 2147483648
        %v763 = vsel %vm761, %v756, %v762
        %vm764 = vcmp.eq.s32.totalorder %v759, 2
        %v765 = vxor.u32 %v756, 2147483648
        %v766 = vsel %vm764, %v765, %v757
        %v767 = vsel %vm760, %v763, %v766
        %v768 = vsel %vm758, nan, %v767
        %v769 = vand.u32 2147483647, %v251
        %vm770 = vcmp.le.f32.partialorder %v769, 0.7853982
        %vm771 = vcmp.lt.s32.totalorder %v251, 0
        %v772 = vand.u32 %v251, 2139095040
        %v773 = vshrl.u32 %v772, 23
        %v774 = vsub.s32 %v773, 127
        %v775 = vand.u32 2147483647, %v251
        %v776 = vand.u32 %v775, 8388607
        %v777 = vor.u32 %v776, 8388608
        %v778 = vsub.s32 0, %v777
        %v779 = vadd.s32 %v774, 1
        %vm780 = vcmp.gt.s32.totalorder %v779, 0
        %v781 = vsel %vm780, %v779, 0
        %v782 = vshrl.u32 %v781, 5
        %v783 = vand.u32 %v781, 31
        %v784 = vsub.s32 32, %v783
        %v785 = vshrl.u32 683565275, %v784
        %v786 = vshll.u32 683565275, %v783
        %v787 = vshrl.u32 2475754826, %v784
        %v788 = vor.u32 %v786, %v787
        %v789 = vshll.u32 2475754826, %v783
        %v790 = vshrl.u32 2131351028, %v784
        %v791 = vor.u32 %v789, %v790
        %v792 = vshll.u32 2131351028, %v783
        %v793 = vshrl.u32 2102212464, %v784
        %v794 = vor.u32 %v792, %v793
        %v795 = vshll.u32 2102212464, %v783
        %v796 = vshrl.u32 920167782, %v784
        %v797 = vor.u32 %v795, %v796
        %v798 = vshll.u32 920167782, %v783
        %v799 = vshrl.u32 1326507024, %v784
        %v800 = vor.u32 %v798, %v799
        %vm801 = vcmp.lt.s32.totalorder %v782, 1
        %vm802 = vcmp.lt.s32.totalorder %v782, 2
        %vm803 = vcmp.lt.s32.totalorder %v782, 3
        %vm804 = vcmp.lt.s32.totalorder %v782, 4
        %v805 = vsel %vm801, %v785, %v788
        %v806 = vsel %vm804, %v794, 2102212464
        %v807 = vsel %vm803, %v791, %v806
        %v808 = vsel %vm802, %v805, %v807
        %v809 = vsel %vm801, %v788, %v791
        %v810 = vsel %vm804, %v797, 920167782
        %v811 = vsel %vm803, %v794, %v810
        %v812 = vsel %vm802, %v809, %v811
        %v813 = vsel %vm801, %v791, %v794
        %v814 = vsel %vm804, %v800, 1326507024
        %v815 = vsel %vm803, %v797, %v814
        %v816 = vsel %vm802, %v813, %v815
        %v817 = vshll.u32 %v777, 8
        %v818 = vmul.u32.u64.compose %v817, %v816
        %v819 = vextract.low.u32 %v818
        %v820 = vextract.high.u32 %v818
        %v821 = vmul.u32.u64.compose %v817, %v812
        %v822 = vextract.low.u32 %v821
        %v823 = vextract.high.u32 %v821
        %v824 = vmul.u32 %v817, %v808
        %v825 = vadd.s32 %v820, %v822
        %vm826 = vc.u32 %v820, %v822
        %v827 = vadd.s32 %v823, 1
        %v828 = vsel %vm826, %v827, %v823
        %v829 = vadd.s32 %v824, %v828
        %v830 = vadd.s32 %v829, 536870912
        %v831 = vshrl.u32 %v830, 30
        %v832 = vshll.u32 %v831, 30
        %v833 = vsub.s32 %v829, %v832
        %vm834 = vcmp.lt.s32.totalorder %v833, 0
        %v835 = vsub.s32 0, %v833
        %v836 = vsel %vm834, %v835, %v833
        %v837 = vclz %v836
        %v838 = vsub.s32 %v837, 2
        %vm839 = vcmp.gt.s32.totalorder 0, %v838
        %v840 = vsel %vm839, 0, %v838
        %v841 = vsub.s32 32, %v840
        %v842 = vshll.u32 %v833, %v840
        %v843 = vshrl.u32 %v825, %v841
        %v844 = vor.u32 %v842, %v843
        %v845 = vsub.s32 4294967266, %v840
        %v846 = vadd.s32 %v845, 127
        %v847 = vshll.u32 %v846, 23
        %v848 = vor.u32 4788187, %v847
        %v849 = vand.u32 2147483647, %v848
        %v851 = vcvt.s32.f32 %v844
        %v852 = vmul.f32 %v851, %v849
        %v853 = vxor.u32 %v852, 2147483648
        %v854 = vsel %vm771, %v853, %v852
        %v855 = vsub.s32 4, %v831
        %v856 = vsel %vm771, %v855, %v831
        %v857 = vsel %vm770, %v251, %v854
        %v858 = vsel %vm770, 0, %v856
        %v859 = vcosq.f32.pop %v857
        %v860 = vsinq.f32.pop %v857
        %vm861 = vweird.f32 %v251
        %v862 = vand.u32 %v858, 3
        %vm863 = vcmp.lt.s32.totalorder %v862, 2
        %vm864 = vcmp.eq.s32.totalorder %v862, 0
        %v865 = vxor.u32 %v860, 2147483648
        %v866 = vsel %vm864, %v859, %v865
        %vm867 = vcmp.eq.s32.totalorder %v862, 2
        %v868 = vxor.u32 %v859, 2147483648
        %v869 = vsel %vm867, %v868, %v860
        %v870 = vsel %vm863, %v866, %v869
        %v871 = vsel %vm861, nan, %v870
        %v872 = vand.u32 2147483647, %v252
        %vm873 = vcmp.le.f32.partialorder %v872, 0.7853982
        %vm874 = vcmp.lt.s32.totalorder %v252, 0
        %v875 = vand.u32 %v252, 2139095040
        %v876 = vshrl.u32 %v875, 23
        %v877 = vsub.s32 %v876, 127
        %v878 = vand.u32 2147483647, %v252
        %v879 = vand.u32 %v878, 8388607
        %v880 = vor.u32 %v879, 8388608
        %v881 = vsub.s32 0, %v880
        %v882 = vadd.s32 %v877, 1
        %vm883 = vcmp.gt.s32.totalorder %v882, 0
        %v884 = vsel %vm883, %v882, 0
        %v885 = vshrl.u32 %v884, 5
        %v886 = vand.u32 %v884, 31
        %v887 = vsub.s32 32, %v886
        %v888 = vshrl.u32 683565275, %v887
        %v889 = vshll.u32 683565275, %v886
        %v890 = vshrl.u32 2475754826, %v887
        %v891 = vor.u32 %v889, %v890
        %v892 = vshll.u32 2475754826, %v886
        %v893 = vshrl.u32 2131351028, %v887
        %v894 = vor.u32 %v892, %v893
        %v895 = vshll.u32 2131351028, %v886
        %v896 = vshrl.u32 2102212464, %v887
        %v897 = vor.u32 %v895, %v896
        %v898 = vshll.u32 2102212464, %v886
        %v899 = vshrl.u32 920167782, %v887
        %v900 = vor.u32 %v898, %v899
        %v901 = vshll.u32 920167782, %v886
        %v902 = vshrl.u32 1326507024, %v887
        %v903 = vor.u32 %v901, %v902
        %vm904 = vcmp.lt.s32.totalorder %v885, 1
        %vm905 = vcmp.lt.s32.totalorder %v885, 2
        %vm906 = vcmp.lt.s32.totalorder %v885, 3
        %vm907 = vcmp.lt.s32.totalorder %v885, 4
        %v908 = vsel %vm904, %v888, %v891
        %v909 = vsel %vm907, %v897, 2102212464
        %v910 = vsel %vm906, %v894, %v909
        %v911 = vsel %vm905, %v908, %v910
        %v912 = vsel %vm904, %v891, %v894
        %v913 = vsel %vm907, %v900, 920167782
        %v914 = vsel %vm906, %v897, %v913
        %v915 = vsel %vm905, %v912, %v914
        %v916 = vsel %vm904, %v894, %v897
        %v917 = vsel %vm907, %v903, 1326507024
        %v918 = vsel %vm906, %v900, %v917
        %v919 = vsel %vm905, %v916, %v918
        %v920 = vshll.u32 %v880, 8
        %v921 = vmul.u32.u64.compose %v920, %v919
        %v922 = vextract.low.u32 %v921
        %v923 = vextract.high.u32 %v921
        %v924 = vmul.u32.u64.compose %v920, %v915
        %v925 = vextract.low.u32 %v924
        %v926 = vextract.high.u32 %v924
        %v927 = vmul.u32 %v920, %v911
        %v928 = vadd.s32 %v923, %v925
        %vm929 = vc.u32 %v923, %v925
        %v930 = vadd.s32 %v926, 1
        %v931 = vsel %vm929, %v930, %v926
        %v932 = vadd.s32 %v927, %v931
        %v933 = vadd.s32 %v932, 536870912
        %v934 = vshrl.u32 %v933, 30
        %v935 = vshll.u32 %v934, 30
        %v936 = vsub.s32 %v932, %v935
        %vm937 = vcmp.lt.s32.totalorder %v936, 0
        %v938 = vsub.s32 0, %v936
        %v939 = vsel %vm937, %v938, %v936
        %v940 = vclz %v939
        %v941 = vsub.s32 %v940, 2
        %vm942 = vcmp.gt.s32.totalorder 0, %v941
        %v943 = vsel %vm942, 0, %v941
        %v944 = vsub.s32 32, %v943
        %v945 = vshll.u32 %v936, %v943
        %v946 = vshrl.u32 %v928, %v944
        %v947 = vor.u32 %v945, %v946
        %v948 = vsub.s32 4294967266, %v943
        %v949 = vadd.s32 %v948, 127
        %v950 = vshll.u32 %v949, 23
        %v951 = vor.u32 4788187, %v950
        %v952 = vand.u32 2147483647, %v951
        %v954 = vcvt.s32.f32 %v947
        %v955 = vmul.f32 %v954, %v952
        %v956 = vxor.u32 %v955, 2147483648
        %v957 = vsel %vm874, %v956, %v955
        %v958 = vsub.s32 4, %v934
        %v959 = vsel %vm874, %v958, %v934
        %v960 = vsel %vm873, %v252, %v957
        %v961 = vsel %vm873, 0, %v959
        %v962 = vcosq.f32.pop %v960
        %v963 = vsinq.f32.pop %v960
        %vm964 = vweird.f32 %v252
        %v965 = vand.u32 %v961, 3
        %vm966 = vcmp.lt.s32.totalorder %v965, 2
        %vm967 = vcmp.eq.s32.totalorder %v965, 0
        %v968 = vxor.u32 %v963, 2147483648
        %v969 = vsel %vm967, %v962, %v968
        %vm970 = vcmp.eq.s32.totalorder %v965, 2
        %v971 = vxor.u32 %v962, 2147483648
        %v972 = vsel %vm970, %v971, %v963
        %v973 = vsel %vm966, %v969, %v972
        %v974 = vsel %vm964, nan, %v973
        %v975 = vand.u32 2147483647, %v253
        %vm976 = vcmp.le.f32.partialorder %v975, 0.7853982
        %vm977 = vcmp.lt.s32.totalorder %v253, 0
        %v978 = vand.u32 %v253, 2139095040
        %v979 = vshrl.u32 %v978, 23
        %v980 = vsub.s32 %v979, 127
        %v981 = vand.u32 2147483647, %v253
        %v982 = vand.u32 %v981, 8388607
        %v983 = vor.u32 %v982, 8388608
        %v984 = vsub.s32 0, %v983
        %v985 = vadd.s32 %v980, 1
        %vm986 = vcmp.gt.s32.totalorder %v985, 0
        %v987 = vsel %vm986, %v985, 0
        %v988 = vshrl.u32 %v987, 5
        %v989 = vand.u32 %v987, 31
        %v990 = vsub.s32 32, %v989
        %v991 = vshrl.u32 683565275, %v990
        %v992 = vshll.u32 683565275, %v989
        %v993 = vshrl.u32 2475754826, %v990
        %v994 = vor.u32 %v992, %v993
        %v995 = vshll.u32 2475754826, %v989
        %v996 = vshrl.u32 2131351028, %v990
        %v997 = vor.u32 %v995, %v996
        %v998 = vshll.u32 2131351028, %v989
        %v999 = vshrl.u32 2102212464, %v990
        %v1000 = vor.u32 %v998, %v999
        %v1001 = vshll.u32 2102212464, %v989
        %v1002 = vshrl.u32 920167782, %v990
        %v1003 = vor.u32 %v1001, %v1002
        %v1004 = vshll.u32 920167782, %v989
        %v1005 = vshrl.u32 1326507024, %v990
        %v1006 = vor.u32 %v1004, %v1005
        %vm1007 = vcmp.lt.s32.totalorder %v988, 1
        %vm1008 = vcmp.lt.s32.totalorder %v988, 2
        %vm1009 = vcmp.lt.s32.totalorder %v988, 3
        %vm1010 = vcmp.lt.s32.totalorder %v988, 4
        %v1011 = vsel %vm1007, %v991, %v994
        %v1012 = vsel %vm1010, %v1000, 2102212464
        %v1013 = vsel %vm1009, %v997, %v1012
        %v1014 = vsel %vm1008, %v1011, %v1013
        %v1015 = vsel %vm1007, %v994, %v997
        %v1016 = vsel %vm1010, %v1003, 920167782
        %v1017 = vsel %vm1009, %v1000, %v1016
        %v1018 = vsel %vm1008, %v1015, %v1017
        %v1019 = vsel %vm1007, %v997, %v1000
        %v1020 = vsel %vm1010, %v1006, 1326507024
        %v1021 = vsel %vm1009, %v1003, %v1020
        %v1022 = vsel %vm1008, %v1019, %v1021
        %v1023 = vshll.u32 %v983, 8
        %v1024 = vmul.u32.u64.compose %v1023, %v1022
        %v1025 = vextract.low.u32 %v1024
        %v1026 = vextract.high.u32 %v1024
        %v1027 = vmul.u32.u64.compose %v1023, %v1018
        %v1028 = vextract.low.u32 %v1027
        %v1029 = vextract.high.u32 %v1027
        %v1030 = vmul.u32 %v1023, %v1014
        %v1031 = vadd.s32 %v1026, %v1028
        %vm1032 = vc.u32 %v1026, %v1028
        %v1033 = vadd.s32 %v1029, 1
        %v1034 = vsel %vm1032, %v1033, %v1029
        %v1035 = vadd.s32 %v1030, %v1034
        %v1036 = vadd.s32 %v1035, 536870912
        %v1037 = vshrl.u32 %v1036, 30
        %v1038 = vshll.u32 %v1037, 30
        %v1039 = vsub.s32 %v1035, %v1038
        %vm1040 = vcmp.lt.s32.totalorder %v1039, 0
        %v1041 = vsub.s32 0, %v1039
        %v1042 = vsel %vm1040, %v1041, %v1039
        %v1043 = vclz %v1042
        %v1044 = vsub.s32 %v1043, 2
        %vm1045 = vcmp.gt.s32.totalorder 0, %v1044
        %v1046 = vsel %vm1045, 0, %v1044
        %v1047 = vsub.s32 32, %v1046
        %v1048 = vshll.u32 %v1039, %v1046
        %v1049 = vshrl.u32 %v1031, %v1047
        %v1050 = vor.u32 %v1048, %v1049
        %v1051 = vsub.s32 4294967266, %v1046
        %v1052 = vadd.s32 %v1051, 127
        %v1053 = vshll.u32 %v1052, 23
        %v1054 = vor.u32 4788187, %v1053
        %v1055 = vand.u32 2147483647, %v1054
        %v1057 = vcvt.s32.f32 %v1050
        %v1058 = vmul.f32 %v1057, %v1055
        %v1059 = vxor.u32 %v1058, 2147483648
        %v1060 = vsel %vm977, %v1059, %v1058
        %v1061 = vsub.s32 4, %v1037
        %v1062 = vsel %vm977, %v1061, %v1037
        %v1063 = vsel %vm976, %v253, %v1060
        %v1064 = vsel %vm976, 0, %v1062
        %v1065 = vcosq.f32.pop %v1063
        %v1066 = vsinq.f32.pop %v1063
        %vm1067 = vweird.f32 %v253
        %v1068 = vand.u32 %v1064, 3
        %vm1069 = vcmp.lt.s32.totalorder %v1068, 2
        %vm1070 = vcmp.eq.s32.totalorder %v1068, 0
        %v1071 = vxor.u32 %v1066, 2147483648
        %v1072 = vsel %vm1070, %v1065, %v1071
        %vm1073 = vcmp.eq.s32.totalorder %v1068, 2
        %v1074 = vxor.u32 %v1065, 2147483648
        %v1075 = vsel %vm1073, %v1074, %v1066
        %v1076 = vsel %vm1069, %v1072, %v1075
        %v1077 = vsel %vm1067, nan, %v1076
        %v1078 = vadd.f32 %v356, 1.0
        %v1079 = vadd.f32 %v459, 1.0
        %v1080 = vadd.f32 %v562, 1.0
        %v1081 = vadd.f32 %v665, 1.0
        %v1082 = vadd.f32 %v768, 1.0
        %v1083 = vadd.f32 %v871, 1.0
        %v1084 = vadd.f32 %v974, 1.0
        %v1085 = vadd.f32 %v1077, 1.0
        %v1086 = vmul.f32 %v1078, 0.5
        %v1087 = vmul.f32 %v1079, 0.5
        %v1088 = vmul.f32 %v1080, 0.5
        %v1089 = vmul.f32 %v1081, 0.5
        %v1090 = vmul.f32 %v1082, 0.5
        %v1091 = vmul.f32 %v1083, 0.5
        %v1092 = vmul.f32 %v1084, 0.5
        %v1093 = vmul.f32 %v1085, 0.5
        %vm1094 = vcmp.lt.f32.partialorder %v226, 5.0
        %vm1095 = vcmp.lt.f32.partialorder %v227, 5.0
        %vm1096 = vcmp.lt.f32.partialorder %v228, 5.0
        %vm1097 = vcmp.lt.f32.partialorder %v229, 5.0
        %vm1098 = vcmp.lt.f32.partialorder %v230, 5.0
        %vm1099 = vcmp.lt.f32.partialorder %v231, 5.0
        %vm1100 = vcmp.lt.f32.partialorder %v232, 5.0
        %vm1101 = vcmp.lt.f32.partialorder %v233, 5.0
        %v1102 = vsel %vm1094, %v1086, 0.0
        %v1103 = vsel %vm1095, %v1087, 0.0
        %v1104 = vsel %vm1096, %v1088, 0.0
        %v1105 = vsel %vm1097, %v1089, 0.0
        %v1106 = vsel %vm1098, %v1090, 0.0
        %v1107 = vsel %vm1099, %v1091, 0.0
        %v1108 = vsel %vm1100, %v1092, 0.0
        %v1109 = vsel %vm1101, %v1093, 0.0
        %v1110 = vsub.f32 %v1102, 1.0
        %v1111 = vsub.f32 %v1103, 1.0
        %v1112 = vsub.f32 %v1104, 1.0
        %v1113 = vsub.f32 %v1105, 1.0
        %v1114 = vsub.f32 %v1106, 1.0
        %v1115 = vsub.f32 %v1107, 1.0
        %v1116 = vsub.f32 %v1108, 1.0
        %v1117 = vsub.f32 %v1109, 1.0
        %v1118 = vsel %vm224, 1, 0
        %v1119 = vsel %vm225, 1, 0
        %vm1120 = vcmp.eq.s32.totalorder %v1118, 1
        %vm1121 = vcmp.eq.s32.totalorder %v1119, 1
        %v1122 = vsel %vm1120, %v1110, %v1102
        %v1123 = vsel %vm1121, %v1111, %v1103
        %v1124 = vsel %vm1120, %v1112, %v1104
        %v1125 = vsel %vm1121, %v1113, %v1105
        %v1126 = vsel %vm1120, %v1114, %v1106
        %v1127 = vsel %vm1121, %v1115, %v1107
        %v1128 = vsel %vm1120, %v1116, %v1108
        %v1129 = vsel %vm1121, %v1117, %v1109
        %1131 = vset.pattern.permute.xlu0 0
        %1132 = vperm.xlu0 %1131, %v234
        %v1133 = vpop.permute.xlu0 %1132
        %1136 = vset.pattern.permute.xlu0 0
        %1137 = vperm.xlu0 %1136, %v235
        %v1138 = vpop.permute.xlu0 %1137
        %1141 = vset.pattern.permute.xlu0 0
        %1142 = vperm.xlu0 %1141, %v236
        %v1143 = vpop.permute.xlu0 %1142
        %1146 = vset.pattern.permute.xlu0 0
        %1147 = vperm.xlu0 %1146, %v237
        %v1148 = vpop.permute.xlu0 %1147
        %1151 = vset.pattern.permute.xlu0 0
        %1152 = vperm.xlu0 %1151, %v238
        %v1153 = vpop.permute.xlu0 %1152
        %1156 = vset.pattern.permute.xlu0 0
        %1157 = vperm.xlu0 %1156, %v239
        %v1158 = vpop.permute.xlu0 %1157
        %1161 = vset.pattern.permute.xlu0 0
        %1162 = vperm.xlu0 %1161, %v240
        %v1163 = vpop.permute.xlu0 %1162
        %1166 = vset.pattern.permute.xlu0 0
        %1167 = vperm.xlu0 %1166, %v241
        %v1168 = vpop.permute.xlu0 %1167
        %v1170 = vmul.f32 %v1122, %v1133
        %v1171 = vmul.f32 %v1123, %v1138
        %v1172 = vmul.f32 %v1124, %v1143
        %v1173 = vmul.f32 %v1125, %v1148
        %v1174 = vmul.f32 %v1126, %v1153
        %v1175 = vmul.f32 %v1127, %v1158
        %v1176 = vmul.f32 %v1128, %v1163
        %v1177 = vmul.f32 %v1129, %v1168
        %v1182 = vlaneseq
        %v1183 = vshrl.u32 %v1182, 7
        %v1184 = vsub.s32 0, %v1183
        %v1185 = vrot.slane %v242, %v1184
        %v1186 = vlaneseq
        %v1187 = vshrl.u32 %v1186, 7
        %v1188 = vsub.s32 0, %v1187
        %v1189 = vrot.slane %v243, %v1188
        %v1190 = vlaneseq
        %v1191 = vshrl.u32 %v1190, 7
        %v1192 = vsub.s32 0, %v1191
        %v1193 = vrot.slane %v244, %v1192
        %v1194 = vlaneseq
        %v1195 = vshrl.u32 %v1194, 7
        %v1196 = vsub.s32 0, %v1195
        %v1197 = vrot.slane %v245, %v1196
        %v1202 = vmul.f32 %v1170, %v1185
        %v1203 = vmul.f32 %v1171, %v1185
        %v1204 = vmul.f32 %v1172, %v1189
        %v1205 = vmul.f32 %v1173, %v1189
        %v1206 = vmul.f32 %v1174, %v1193
        %v1207 = vmul.f32 %v1175, %v1193
        %v1208 = vmul.f32 %v1176, %v1197
        %v1209 = vmul.f32 %v1177, %v1197
        %vm1210 = vcmask 130048
        %v1211 = vsel %vm1210, %v1202, 0.0
        %1212 = vadd.xlane.f32.xlu0 %v1211
        %v1213 = vpop.xlane.xlu0 %1212
        %v1214 = vsel %vm1210, %v1203, 0.0
        %1215 = vadd.xlane.f32.xlu0 %v1214
        %v1216 = vpop.xlane.xlu0 %1215
        %v1217 = vsel %vm1210, %v1204, 0.0
        %1218 = vadd.xlane.f32.xlu0 %v1217
        %v1219 = vpop.xlane.xlu0 %1218
        %v1220 = vsel %vm1210, %v1205, 0.0
        %1221 = vadd.xlane.f32.xlu0 %v1220
        %v1222 = vpop.xlane.xlu0 %1221
        %v1223 = vsel %vm1210, %v1206, 0.0
        %1224 = vadd.xlane.f32.xlu0 %v1223
        %v1225 = vpop.xlane.xlu0 %1224
        %v1226 = vsel %vm1210, %v1207, 0.0
        %1227 = vadd.xlane.f32.xlu0 %v1226
        %v1228 = vpop.xlane.xlu0 %1227
        %v1229 = vsel %vm1210, %v1208, 0.0
        %1230 = vadd.xlane.f32.xlu0 %v1229
        %v1231 = vpop.xlane.xlu0 %1230
        %v1232 = vsel %vm1210, %v1209, 0.0
        %1233 = vadd.xlane.f32.xlu0 %v1232
        %v1234 = vpop.xlane.xlu0 %1233
        %vm1235 = vcmp.gt.f32.partialorder %v1213, 0.0
        %vm1236 = vcmp.gt.f32.partialorder %v1216, 0.0
        %vm1237 = vcmp.gt.f32.partialorder %v1219, 0.0
        %vm1238 = vcmp.gt.f32.partialorder %v1222, 0.0
        %vm1239 = vcmp.gt.f32.partialorder %v1225, 0.0
        %vm1240 = vcmp.gt.f32.partialorder %v1228, 0.0
        %vm1241 = vcmp.gt.f32.partialorder %v1231, 0.0
        %vm1242 = vcmp.gt.f32.partialorder %v1234, 0.0
        %v1243 = vrsqrt.pop %v1213
        %v1244 = vrsqrt.pop %v1216
        %v1245 = vrsqrt.pop %v1219
        %v1246 = vrsqrt.pop %v1222
        %v1247 = vrsqrt.pop %v1225
        %v1248 = vrsqrt.pop %v1228
        %v1249 = vrsqrt.pop %v1231
        %v1250 = vrsqrt.pop %v1234
        %v1251 = vsel %vm1235, %v1243, 0.0
        %v1252 = vsel %vm1236, %v1244, 0.0
        %v1253 = vsel %vm1237, %v1245, 0.0
        %v1254 = vsel %vm1238, %v1246, 0.0
        %v1255 = vsel %vm1239, %v1247, 0.0
        %v1256 = vsel %vm1240, %v1248, 0.0
        %v1257 = vsel %vm1241, %v1249, 0.0
        %v1258 = vsel %vm1242, %v1250, 0.0
        %v1259 = vadd.f32 %v1211, %v1214
        %v1260 = vrot.slane %v1259, 4
        %v1261 = vadd.f32 %v1259, %v1260
        %v1262 = vrot.slane %v1261, 2
        %v1263 = vadd.f32 %v1261, %v1262
        %v1264 = vrot.slane %v1263, 1
        %v1265 = vadd.f32 %v1263, %v1264
        %v1266 = vadd.f32 %v1217, %v1220
        %v1267 = vrot.slane %v1266, 4
        %v1268 = vadd.f32 %v1266, %v1267
        %v1269 = vrot.slane %v1268, 2
        %v1270 = vadd.f32 %v1268, %v1269
        %v1271 = vrot.slane %v1270, 1
        %v1272 = vadd.f32 %v1270, %v1271
        %v1273 = vadd.f32 %v1223, %v1226
        %v1274 = vrot.slane %v1273, 4
        %v1275 = vadd.f32 %v1273, %v1274
        %v1276 = vrot.slane %v1275, 2
        %v1277 = vadd.f32 %v1275, %v1276
        %v1278 = vrot.slane %v1277, 1
        %v1279 = vadd.f32 %v1277, %v1278
        %v1280 = vadd.f32 %v1229, %v1232
        %v1281 = vrot.slane %v1280, 4
        %v1282 = vadd.f32 %v1280, %v1281
        %v1283 = vrot.slane %v1282, 2
        %v1284 = vadd.f32 %v1282, %v1283
        %v1285 = vrot.slane %v1284, 1
        %v1286 = vadd.f32 %v1284, %v1285
        %vm1287 = vcmp.gt.f32.partialorder %v1265, 0.0
        %vm1288 = vcmp.gt.f32.partialorder %v1272, 0.0
        %vm1289 = vcmp.gt.f32.partialorder %v1279, 0.0
        %vm1290 = vcmp.gt.f32.partialorder %v1286, 0.0
        %v1291 = vrsqrt.pop %v1265
        %v1292 = vrsqrt.pop %v1272
        %v1293 = vrsqrt.pop %v1279
        %v1294 = vrsqrt.pop %v1286
        %v1295 = vsel %vm1287, %v1291, 0.0
        %v1296 = vsel %vm1288, %v1292, 0.0
        %v1297 = vsel %vm1289, %v1293, 0.0
        %v1298 = vsel %vm1290, %v1294, 0.0
        %v1299 = vmul.f32 %v1202, %v1251
        %v1300 = vmul.f32 %v1203, %v1252
        %v1301 = vmul.f32 %v1204, %v1253
        %v1302 = vmul.f32 %v1205, %v1254
        %v1303 = vmul.f32 %v1206, %v1255
        %v1304 = vmul.f32 %v1207, %v1256
        %v1305 = vmul.f32 %v1208, %v1257
        %v1306 = vmul.f32 %v1209, %v1258
        %v1307 = vmul.f32 %v1299, %v1295
        %v1308 = vmul.f32 %v1300, %v1295
        %v1309 = vmul.f32 %v1301, %v1296
        %v1310 = vmul.f32 %v1302, %v1296
        %v1311 = vmul.f32 %v1303, %v1297
        %v1312 = vmul.f32 %v1304, %v1297
        %v1313 = vmul.f32 %v1305, %v1298
        %v1314 = vmul.f32 %v1306, %v1298
        %1315 = vst.msk [vmem:[%s198] sm:$0xff] %vm1210, %v1307
        %1316 = vst.msk [vmem:[%s198 + $0x8] sm:$0xff] %vm1210, %v1308
        %1317 = vst.msk [vmem:[%s198 + $0x10] sm:$0xff] %vm1210, %v1309
        %1318 = vst.msk [vmem:[%s198 + $0x18] sm:$0xff] %vm1210, %v1310
        %1319 = vst.msk [vmem:[%s198 + $0x20] sm:$0xff] %vm1210, %v1311
        %1320 = vst.msk [vmem:[%s198 + $0x28] sm:$0xff] %vm1210, %v1312
        %1321 = vst.msk [vmem:[%s198 + $0x30] sm:$0xff] %vm1210, %v1313
        %1322 = vst.msk [vmem:[%s198 + $0x38] sm:$0xff] %vm1210, %v1314
        %s1323 = sand.u32 %s103, 1
        %s1324 = scalar_lea.sflag [#allocation3], %s1323
        %s1325 = sand.u32 %s103, 1
        %s1326 = smul.addr %s1325, 64
        %s1327 = scalar_lea.vmem [#allocation2], %s1326
        // Predicated region
        $region33: #{tpu_custom_call.1} parent=31 // pred_check
          %p1328 = pneg %p113
        $region34: #{tpu_custom_call.1} parent=31 // pred_check_branch
          %1330 = sbr.rel (%p1328) target = $region36
        $region35: #{tpu_custom_call.1} parent=31 // pred_region
          %s1331 = smul.u32 4, %s17
          %s1333 = ssub.s32 1024, 1024
          %1334 = vsyncadd %s1324, %s1333
          %s1335 = smul.addr %s1331, 2
          %s1336 = smul.addr %s1335, 128
          %s1337 = scalar_lea.hbm %s3, %s1336
          %s1338 = sshll.u32 %s1327, 4
          %s1339 = int_to_ptr.vmem [resolvable:$true] %s1338
          %1344 = dma.vmem_to_hbm [thread:$0]  %s1339, 1024, %s1337, %s1324, 128, 128, 8
        $region36: #{tpu_custom_call.1} parent=31 // pred_fallthru
          _
      $region32: #{tpu_custom_call.1} parent=5 // pred_fallthru
        _
      %p1345 = scmp.le.s32.totalorder 2, %s12
      // Predicated region
      $region37: #{tpu_custom_call.1} parent=5 // pred_check
        %p1346 = pneg %p1345
      $region38: #{tpu_custom_call.1} parent=5 // pred_check_branch
        %1348 = sbr.rel (%p1346) target = $region40
      $region39: #{tpu_custom_call.1} parent=5 // pred_region
        %s1349 = ssub.s32 %s12, 2
        // Predicated region
        $region41: #{tpu_custom_call.1} parent=39 // pred_check
          %p1350 = pneg %p119
        $region42: #{tpu_custom_call.1} parent=39 // pred_check_branch
          %1352 = sbr.rel (%p1350) target = $region44
        $region43: #{tpu_custom_call.1} parent=39 // pred_region
          %s1353 = sand.u32 %s104, 1
          %s1354 = scalar_lea.sflag [#allocation3], %s1353
          %s1355 = sand.u32 %s104, 1
          %s1356 = smul.addr %s1355, 64
          %s1357 = scalar_lea.vmem [#allocation2], %s1356
          %1358 = dma.done %s1354, 1024
        $region44: #{tpu_custom_call.1} parent=39 // pred_fallthru
          _
      $region40: #{tpu_custom_call.1} parent=5 // pred_fallthru
        _
    $region6: #{tpu_custom_call.1} parent=1 // loop_footer
      %s16 = sadd.s32 1, %s12
    $region7: #{tpu_custom_call.1} parent=1 // loop_footer_branch
      %11 = sbr.rel target = $region3
    $region8: #{tpu_custom_call.1} parent=1 // loop_exit
      _
    %1359 = vsyncpa [#allocation3], 1
    %s1360 = scalar_lea.sflag [#allocation3], 1
    %1361 = vsyncpa %s1360, 1

</llo_original>
